<compile_context>
chip_gen: v5e
topology: v5e:2x2
jax: 0.10.0
libtpu: 0.0.40
codegen_flags: <defaults>
</compile_context>

<pallas_src>
import math
import functools

import jax
import jax.numpy as jnp
from jax import lax
from jax.experimental import pallas as pl
from jax.experimental.pallas import tpu as pltpu

_C_PAD = 8                # class dim (3) padded to one sublane group of lanes
_X_TILE_BYTES = 12 << 20  # target per-buffer x tile size (~12 MiB)
_TB_MAX = 2048            # diminishing returns above ~1024 rows per tile


def _round_up(n, m):
    return ((n + m - 1) // m) * m


def _min_sublanes(dtype):
    # Native sublane packing: f32 -> 8, bf16 -> 16, int8/fp8 -> 32.
    return max(8, 32 // jnp.dtype(dtype).itemsize)


def _bert_classify_kernel(x_ref, w_ref, b_ref, o_ref, *, activate_fun):
    # x_ref: (TB, F)  w_ref: (F, 8)  b_ref: (1, 8)  o_ref: (TB, 8)
    # MXU matmul in the input's native dtype, f32 accumulation.
    y = jnp.dot(x_ref[...], w_ref[...], preferred_element_type=jnp.float32)
    y = y + b_ref[...].astype(jnp.float32)

    if activate_fun == "relu":
        out = jnp.maximum(y, 0.0)
    elif activate_fun == "gelu":
        # x * 0.5 * (1 + erf(x / sqrt(2))) -- exact erf GELU, as in the module.
        out = y * 0.5 * (1.0 + lax.erf(y * (1.0 / math.sqrt(2.0))))
    else:
        raise ValueError(f"unknown activate_fun: {activate_fun}")

    o_ref[...] = out.astype(o_ref.dtype)


def bert_classify(x, weight, bias, *, activate_fun="gelu", compute_dtype=None):
    """Forward pass of BertClassify.

    x:      (B, F)       input features
    weight: (C, F)       PyTorch nn.Linear weight layout (C = 3 classes)
    bias:   (C,)         PyTorch nn.Linear bias
    compute_dtype: optional dtype (e.g. jnp.bfloat16) to stream x/W in; the
                   matmul still accumulates in f32 and the output keeps the
                   original x dtype.
    returns (B, C)
    """
    B, F = x.shape
    C = weight.shape[0]
    out_dtype = x.dtype

    if compute_dtype is not None:
        x = x.astype(compute_dtype)
        weight = weight.astype(compute_dtype)

    # --- small padded weight / bias: class dim 3 -> 8 ------------------------
    w_pad = jnp.zeros((F, _C_PAD), dtype=weight.dtype).at[:, :C].set(weight.T)
    b_pad = jnp.zeros((1, _C_PAD), dtype=jnp.float32).at[:, :C].set(
        bias.astype(jnp.float32).reshape(1, C))

    # --- batch tiling ---------------------------------------------------------
    itemsize = jnp.dtype(x.dtype).itemsize
    sub = _min_sublanes(x.dtype)

    # Byte-budget cap on the x tile, rounded to the native sublane count.
    tb_cap = max(sub, (_X_TILE_BYTES // max(1, F * itemsize)) // sub * sub)
    tb_cap = min(tb_cap, _TB_MAX)
    # Guarantee >= 2 grid steps for non-tiny batches so the "parallel" batch
    # axis actually splits across v7x's two TensorCores.
    if B > sub:
        tb_cap = min(tb_cap, _round_up(pl.cdiv(B, 2), sub))
    TB = min(tb_cap, _round_up(B, sub))
    grid = pl.cdiv(B, TB)

    # --- explicit VMEM budget (double-buffered x/out, resident W/bias) -------
    out_itemsize = jnp.dtype(out_dtype).itemsize
    w_itemsize = jnp.dtype(w_pad.dtype).itemsize
    vmem_need = (2 * TB * F * itemsize
                 + 2 * TB * _C_PAD * out_itemsize
                 + 2 * F * _C_PAD * w_itemsize
                 + 2 * _C_PAD * 4
                 + (2 << 20))                       # slack for compiler scratch
    vmem_limit = int(min(max(vmem_need, 16 << 20), 48 << 20))

    # --- advisory cost estimate for XLA's scheduler ---------------------------
    cost = pl.CostEstimate(
        flops=2 * B * F * _C_PAD,
        transcendentals=(B * _C_PAD if activate_fun == "gelu" else 0),
        bytes_accessed=(B * F * itemsize
                        + F * _C_PAD * w_itemsize
                        + _C_PAD * 4
                        + B * _C_PAD * out_itemsize),
    )

    kernel = functools.partial(_bert_classify_kernel, activate_fun=activate_fun)

    out_padded = pl.pallas_call(
        kernel,
        out_shape=jax.ShapeDtypeStruct((B, _C_PAD), out_dtype),
        grid_spec=pltpu.PrefetchScalarGridSpec(
            num_scalar_prefetch=0,
            grid=(grid,),
            in_specs=[
                pl.BlockSpec((TB, F), lambda i: (i, 0)),        # x: streamed
                pl.BlockSpec((F, _C_PAD), lambda i: (0, 0)),    # W: resident
                pl.BlockSpec((1, _C_PAD), lambda i: (0, 0)),    # b: resident
            ],
            out_specs=pl.BlockSpec((TB, _C_PAD), lambda i: (i, 0)),
        ),
        compiler_params=pltpu.CompilerParams(
            dimension_semantics=("parallel",),   # v7x: shard batch over 2 TCs
            vmem_limit_bytes=vmem_limit,
        ),
        cost_estimate=cost,
    )(x, w_pad, b_pad)

    return out_padded[:, :C]


def _reference(x, weight, bias, activate_fun="gelu"):
    y = x @ weight.T + bias
    if activate_fun == "relu":
        return jnp.maximum(y, 0.0)
    return y * 0.5 * (1.0 + lax.erf(y / math.sqrt(2.0)))


if __name__ == "__main__":
    # Deterministic small-shape example consistent with the module:
    # in_feature=32, classes=3.
    key = jax.random.PRNGKey(0)
    kx, kw, kb, kx2 = jax.random.split(key, 4)

    F, C = 32, 3
    bound = 1.0 / math.sqrt(F)
    weight = jax.random.uniform(kw, (C, F), minval=-bound, maxval=bound,
                                dtype=jnp.float32)
    bias = jax.random.uniform(kb, (C,), minval=-bound, maxval=bound,
                              dtype=jnp.float32)

    # Case 1: batch divisible by the sublane count.
    B1 = 8
    x1 = jax.random.normal(kx, (B1, F), dtype=jnp.float32)
    out_gelu = jax.block_until_ready(
        bert_classify(x1, weight, bias, activate_fun="gelu"))
    out_relu = jax.block_until_ready(
        bert_classify(x1, weight, bias, activate_fun="relu"))
    assert out_gelu.shape == (B1, C)
    assert out_relu.shape == (B1, C)
    assert jnp.allclose(out_gelu, _reference(x1, weight, bias, "gelu"),
                        atol=1e-5, rtol=1e-5), "gelu mismatch"
    assert jnp.allclose(out_relu, _reference(x1, weight, bias, "relu"),
                        atol=1e-5, rtol=1e-5), "relu mismatch"

    # Case 2: ragged batch (exercises the clipped last block, 2 grid steps).
    B2 = 10
    x2 = jax.random.normal(kx2, (B2, F), dtype=jnp.float32)
    out_ragged = jax.block_until_ready(
        bert_classify(x2, weight, bias, activate_fun="gelu"))
    assert out_ragged.shape == (B2, C)
    assert jnp.allclose(out_ragged, _reference(x2, weight, bias, "gelu"),
                        atol=1e-5, rtol=1e-5), "ragged gelu mismatch"

    print("KERNEL_OK")
</pallas_src>

<mosaic_0001>
module attributes {stable_mosaic.version = 11 : i64} {
  func.func @_bert_classify_kernel(%arg0: i32, %arg1: memref<8x32xf32, #tpu.memory_space<vmem>>, %arg2: memref<32x8xf32, #tpu.memory_space<vmem>>, %arg3: memref<1x8xf32, #tpu.memory_space<vmem>>, %arg4: memref<8x8xf32, #tpu.memory_space<vmem>>) attributes {dimension_semantics = [#tpu.dimension_semantics<parallel>], iteration_bounds = array<i64: 1>, scalar_prefetch = 0 : i64, scratch_operands = 0 : i64, tpu.core_type = #tpu.core_type<tc>, window_params = [{transform_indices = @transform_0, window_bounds = array<i64: 8, 32>}, {pipeline_mode = #tpu.pipeline_mode<synchronous>, transform_indices = @transform_1, window_bounds = array<i64: 32, 8>}, {pipeline_mode = #tpu.pipeline_mode<synchronous>, transform_indices = @transform_2, window_bounds = array<i64: 1, 8>}, {transform_indices = @transform_3, window_bounds = array<i64: 8, 8>}]} {
    %c0 = arith.constant 0 : index
    %c0_0 = arith.constant 0 : index
    %0 = vector.load %arg1[%c0, %c0_0] : memref<8x32xf32, #tpu.memory_space<vmem>>, vector<8x32xf32>
    %c0_1 = arith.constant 0 : index
    %c0_2 = arith.constant 0 : index
    %1 = vector.load %arg2[%c0_1, %c0_2] : memref<32x8xf32, #tpu.memory_space<vmem>>, vector<32x8xf32>
    %cst = arith.constant dense<0.000000e+00> : vector<8x8xf32>
    %2 = tpu.matmul %0, %1, %cst {dimension_numbers = #tpu.dot_dimension_numbers<[1], [0], [0], [1], [0, 0, 1, 1], [], []>} : vector<8x32xf32>, vector<32x8xf32>, vector<8x8xf32> -> vector<8x8xf32>
    %c0_3 = arith.constant 0 : index
    %c0_4 = arith.constant 0 : index
    %3 = vector.load %arg3[%c0_3, %c0_4] : memref<1x8xf32, #tpu.memory_space<vmem>>, vector<1x8xf32>
    %4 = vector.broadcast %3 : vector<1x8xf32> to vector<8x8xf32>
    %5 = arith.addf %2, %4 : vector<8x8xf32>
    %cst_5 = arith.constant 5.000000e-01 : f32
    %6 = vector.broadcast %cst_5 : f32 to vector<8x8xf32>
    %7 = arith.mulf %5, %6 : vector<8x8xf32>
    %cst_6 = arith.constant 0.707106769 : f32
    %8 = vector.broadcast %cst_6 : f32 to vector<8x8xf32>
    %9 = arith.mulf %5, %8 : vector<8x8xf32>
    %10 = math.erf %9 : vector<8x8xf32>
    %cst_7 = arith.constant 1.000000e+00 : f32
    %11 = vector.broadcast %cst_7 : f32 to vector<8x8xf32>
    %12 = arith.addf %11, %10 : vector<8x8xf32>
    %13 = arith.mulf %7, %12 : vector<8x8xf32>
    %c0_8 = arith.constant 0 : index
    %c0_9 = arith.constant 0 : index
    %14 = vector.load %arg4[%c0_8, %c0_9] : memref<8x8xf32, #tpu.memory_space<vmem>>, vector<8x8xf32>
    tpu.vector_store %arg4[%c0_8, %c0_9], %13 {strides = array<i32>} : memref<8x8xf32, #tpu.memory_space<vmem>>, vector<8x8xf32>,
    return
  }
  func.func @transform_0(%arg0: i32) -> (i32, i32) {
    %c0_i32 = arith.constant 0 : i32
    %c0_i32_0 = arith.constant 0 : i32
    return %arg0, %c0_i32 : i32, i32
  }
  func.func @transform_1(%arg0: i32) -> (i32, i32) {
    %c0_i32 = arith.constant 0 : i32
    %c0_i32_0 = arith.constant 0 : i32
    %c0_i32_1 = arith.constant 0 : i32
    return %c0_i32, %c0_i32_0 : i32, i32
  }
  func.func @transform_2(%arg0: i32) -> (i32, i32) {
    %c0_i32 = arith.constant 0 : i32
    %c0_i32_0 = arith.constant 0 : i32
    %c0_i32_1 = arith.constant 0 : i32
    return %c0_i32, %c0_i32_0 : i32, i32
  }
  func.func @transform_3(%arg0: i32) -> (i32, i32) {
    %c0_i32 = arith.constant 0 : i32
    %c0_i32_0 = arith.constant 0 : i32
    return %arg0, %c0_i32 : i32, i32
  }
}

</mosaic_0001>

<llo_original>
// kernel: tpu_custom_call.1
$region0: #{tpu_custom_call.1}
  #allocation0 [shape = 'u32[]', space=smem, size = 0x4, offset = 0x4, fixed_abs, tag = 'smem constant byte address 0x4 - core index']
  #allocation1 [shape = 'u32[72,128]{1,0:T(1,128)}', space=vmem, size = 0x9000, scoped, tag = 'internal scratch']
  %s0 = inlined_call_operand.vmem [shape: f32[8,32], index: 0, kind: input, shape index: {}]
  %s1 = inlined_call_operand.vmem [shape: f32[32,8], index: 1, kind: input, shape index: {}]
  %s2 = inlined_call_operand.vmem [shape: f32[1,8], index: 2, kind: input, shape index: {}]
  %s3 = inlined_call_operand.hbm [shape: f32[8,8], index: 3, kind: output, shape index: {}]
  %s4 = sld [smem:[#allocation0]]
  $region22: #{tpu_custom_call.1} parent=0
    _
  %s6 = ssub.s32 1, %s4
  %s7 = scalar_select 0, %s6, %s4
  $region1: #{tpu_custom_call.1} parent=0
    #allocation2 [shape = 'u8[4096]{0}', space=vmem, size = 0x1000, scoped, tag = 'output window, operand 0, single buffered']
    #allocation3 [shape = 's32[1]{0}', space=sflag, size = 0x4, scoped, tag = 'scoped memory for tpu_custom_call.1']
    %8 = vsyncpa [#allocation3], 0
    // Predicated region
    $region2: #{tpu_custom_call.1} parent=1 // pred_check
      _
    $region3: #{tpu_custom_call.1} parent=1 // pred_check_branch
      %10 = sbr.rel (0) target = $region5
    $region4: #{tpu_custom_call.1} parent=1 // pred_region
      _
    $region5: #{tpu_custom_call.1} parent=1 // pred_fallthru
      _
    // Predicated region
    $region6: #{tpu_custom_call.1} parent=1 // pred_check
      _
    $region7: #{tpu_custom_call.1} parent=1 // pred_check_branch
      %12 = sbr.rel (0) target = $region9
    $region8: #{tpu_custom_call.1} parent=1 // pred_region
      _
    $region9: #{tpu_custom_call.1} parent=1 // pred_fallthru
      _
    // Predicated region
    $region10: #{tpu_custom_call.1} parent=1 // pred_check
      _
    $region11: #{tpu_custom_call.1} parent=1 // pred_check_branch
      %14 = sbr.rel (0) target = $region13
    $region12: #{tpu_custom_call.1} parent=1 // pred_region
      _
    $region13: #{tpu_custom_call.1} parent=1 // pred_fallthru
      _
    %v15 = vld [vmem:[%s0] sm:$0xff]
    %v16 = vld [vmem:[%s1] sm:$0xff]
    %v17 = vld [vmem:[%s1 + $0x8] sm:$0xff]
    %v18 = vld [vmem:[%s1 + $0x10] sm:$0xff]
    %v19 = vld [vmem:[%s1 + $0x18] sm:$0xff]
    %v20 = vld [vmem:[%s2] sm:$0x1]
    %v22 = vperm.slane %v20, 0
    %vm24 = vcmask 261120
    %v26 = vsel %vm24, %v15, 0
    %28 = vmatpush.msra.mxu0 0.0
    %29 = vmatpush.msra.mxu0 0.0
    %30 = vmatpush.msra.mxu0 0.0
    %31 = vmatpush.msra.mxu0 0.0
    %32 = vmatpush.msra.mxu0 0.0
    %33 = vmatpush.msra.mxu0 0.0
    %34 = vmatpush.msra.mxu0 0.0
    %35 = vmatpush.msra.mxu0 0.0
    %36 = vmatpush.msra.mxu0 0.0
    %37 = vmatpush.msra.mxu0 0.0
    %38 = vmatpush.msra.mxu0 0.0
    %39 = vmatpush.msra.mxu0 0.0
    %40 = vmatpush.msra.mxu0 %v19
    %41 = vmatpush.msra.mxu0 %v18
    %42 = vmatpush.msra.mxu0 %v17
    %43 = vmatpush.msra.mxu0 %v16
    %44 = vmatmul.f32.gmra.mxu0 %v26
    %v45 = vpop.f32.mrf.mxu0
    %v46 = vadd.f32 %v22, %v45
    %47 = vdwg.mxu0
    %v48 = vmul.f32 %v46, 0.5
    %v49 = vmul.f32 %v46, 0.70710677
    %v50 = vmul.f32 %v49, %v49
    %v51 = vmin.f32 16.0, %v50
    %v52 = vmul.f32 %v51, 2.1237322e-06
    %v53 = vadd.f32 %v52, 0.00028619796
    %v54 = vmul.f32 %v51, %v53
    %v55 = vadd.f32 %v54, 0.0036580483
    %v56 = vmul.f32 %v51, %v55
    %v57 = vadd.f32 %v56, 0.05243302
    %v58 = vmul.f32 %v51, %v57
    %v59 = vadd.f32 %v58, 0.18741608
    %v60 = vmul.f32 %v51, %v59
    %v61 = vadd.f32 %v60, 1.1283791
    %v62 = vmul.f32 %v49, %v61
    %v63 = vmul.f32 %v51, 3.8918573e-05
    %v64 = vadd.f32 %v63, 0.001143296
    %v65 = vmul.f32 %v51, %v64
    %v66 = vadd.f32 %v65, 0.014752088
    %v67 = vmul.f32 %v51, %v66
    %v68 = vadd.f32 %v67, 0.112945676
    %v69 = vmul.f32 %v51, %v68
    %v70 = vadd.f32 %v69, 0.4994258
    %v71 = vmul.f32 %v51, %v70
    %v72 = vadd.f32 %v71, 1.0
    %v73 = vrcp.pop %v72
    %v74 = vmul.f32 %v72, %v73
    %v75 = vsub.f32 1.0, %v74
    %v76 = vmul.f32 %v73, %v75
    %v77 = vadd.f32 %v73, %v76
    %vm78 = vweird.f32 %v72
    %vm79 = vweird.f32 %v73
    %vm80 = vmor %vm78, %vm79
    %v81 = vsel %vm80, %v73, %v77
    %v82 = vand.u32 2147483647, %v72
    %vm83 = vcmp.eq.f32.partialorder %v82, 8.507059e+37
    %v84 = vand.u32 %v72, 2147483648
    %v85 = vor.u32 1.1754944e-38, %v84
    %v86 = vsel %vm83, %v85, %v81
    %v87 = vmul.f32 %v62, %v86
    %v88 = vmin.f32 %v87, 1.0
    %v89 = vmax.f32 %v88, -1.0
    %v90 = vadd.f32 %v89, 1.0
    %v91 = vmul.f32 %v48, %v90
    %vm92 = vcmask 64512
    %93 = vst.msk [vmem:[#allocation2] sm:$0xff] %vm92, %v91
    // Predicated region
    $region14: #{tpu_custom_call.1} parent=1 // pred_check
      _
    $region15: #{tpu_custom_call.1} parent=1 // pred_check_branch
      %95 = sbr.rel (0) target = $region17
    $region16: #{tpu_custom_call.1} parent=1 // pred_region
      %97 = vsyncadd [#allocation3], 0
      %s99 = sshll.u32 [#allocation2], 4
      %s100 = int_to_ptr.vmem [resolvable:$true] %s99
      %s101 = sshll.u32 %s3, 4
      %s102 = int_to_ptr.hbm [resolvable:$true] %s101
      %104 = dma.vmem_to_hbm [thread:$0]  %s100, 128, %s102, [#allocation3]
    $region17: #{tpu_custom_call.1} parent=1 // pred_fallthru
      _
    // Predicated region
    $region18: #{tpu_custom_call.1} parent=1 // pred_check
      _
    $region19: #{tpu_custom_call.1} parent=1 // pred_check_branch
      %106 = sbr.rel (0) target = $region21
    $region20: #{tpu_custom_call.1} parent=1 // pred_region
      %108 = dma.done [#allocation3], 128
    $region21: #{tpu_custom_call.1} parent=1 // pred_fallthru
      _
    %109 = vsyncpa [#allocation3], 1

</llo_original>
